<compile_context>
chip_gen: v5e
topology: v5e:2x2
jax: 0.10.0
libtpu: 0.0.40
codegen_flags: <defaults>
</compile_context>

<pallas_src>
import functools

import jax
import jax.numpy as jnp
from jax.experimental import pallas as pl
from jax.experimental.pallas import tpu as pltpu


# ---------------------------------------------------------------------------
# helpers
# ---------------------------------------------------------------------------

def _round_up(v, m):
    return (v + m - 1) // m * m


def _pick_tb(B, per_b_bytes, target_bytes):
    """Largest divisor of B whose (TB, C, HWp) block stays under target_bytes,
    while keeping >= 2 grid steps when B > 1 (v7x has 2 TensorCores)."""
    cap = max(1, (B + 1) // 2)
    best = 1
    for cand in range(1, B + 1):
        if B % cand == 0 and cand <= cap and cand * per_b_bytes <= target_bytes:
            best = cand
    return best


def _vmem_limit(block_bytes):
    # in + out double-buffered plus headroom; stay well under v7x's 64 MiB.
    return int(min(max(6 * block_bytes + (2 << 20), 16 << 20), 48 << 20))


def _excite(pooled_f32, w1, b1, w2, b2):
    """Squeeze-excite MLP on the VPU (no MXU on the serial dependency chain).

    pooled_f32: (T, C) f32; w1: (Cr, C); b1: (1, Cr); w2: (C, Cr); b2: (1, C).
    Returns (T, C) f32 attention in (0, 1).
    """
    w1f = w1.astype(jnp.float32)
    w2f = w2.astype(jnp.float32)
    # FC1: (T, Cr) = pooled @ w1.T + b1, then ReLU  (broadcast-mul + reduce)
    h = jnp.sum(pooled_f32[:, None, :] * w1f[None, :, :], axis=-1)
    h = jnp.maximum(h + b1.astype(jnp.float32), 0.0)
    # FC2: (T, C) = h @ w2.T + b2, then Sigmoid
    a = jnp.sum(h[:, None, :] * w2f[None, :, :], axis=-1)
    return jax.nn.sigmoid(a + b2.astype(jnp.float32))


# ---------------------------------------------------------------------------
# fused single-pass kernel (feature map fits comfortably in VMEM)
# ---------------------------------------------------------------------------

def _mca_fused_kernel(x_ref, w1_ref, b1_ref, w2_ref, b2_ref, o_ref, *, inv_hw):
    x = x_ref[...]                                                 # (TB, C, HWp), native dtype
    # Global average pool over the lane axis; f32 accumulation only, no
    # full-tile f32 materialization of x.
    pooled = jnp.sum(x, axis=-1, dtype=jnp.float32) * inv_hw       # (TB, C) f32
    a = _excite(pooled, w1_ref[...], b1_ref[...], w2_ref[...], b2_ref[...])
    # Channel-wise rescale in x's native dtype.
    o_ref[...] = (x * a[:, :, None].astype(x.dtype)).astype(o_ref.dtype)


def _mca_fused(x2, w1, b1, w2, b2, *, inv_hw, tb):
    B, C, HWp = x2.shape
    Cr = w1.shape[0]
    block_bytes = tb * C * HWp * jnp.dtype(x2.dtype).itemsize
    kern = functools.partial(_mca_fused_kernel, inv_hw=inv_hw)
    return pl.pallas_call(
        kern,
        out_shape=jax.ShapeDtypeStruct((B, C, HWp), x2.dtype),
        grid_spec=pltpu.PrefetchScalarGridSpec(
            num_scalar_prefetch=0,
            grid=(B // tb,),
            in_specs=[
                pl.BlockSpec((tb, C, HWp), lambda b: (b, 0, 0)),   # x
                pl.BlockSpec((Cr, C), lambda b: (0, 0)),           # w1
                pl.BlockSpec((1, Cr), lambda b: (0, 0)),           # b1
                pl.BlockSpec((C, Cr), lambda b: (0, 0)),           # w2
                pl.BlockSpec((1, C), lambda b: (0, 0)),            # b2
            ],
            out_specs=pl.BlockSpec((tb, C, HWp), lambda b: (b, 0, 0)),
        ),
        compiler_params=pltpu.CompilerParams(
            dimension_semantics=("parallel",),
            vmem_limit_bytes=_vmem_limit(block_bytes),
        ),
    )(x2, w1, b1, w2, b2)


# ---------------------------------------------------------------------------
# chunked two-pass fallback (large HW: bound VMEM regardless of image size)
# ---------------------------------------------------------------------------

def _pool_kernel(x_ref, psum_ref):
    # psum block index is constant along the HW grid axis -> accumulator.
    @pl.when(pl.program_id(1) == 0)
    def _():
        psum_ref[...] = jnp.zeros_like(psum_ref)
    psum_ref[...] += jnp.sum(x_ref[...], axis=-1, keepdims=True,
                             dtype=jnp.float32)


def _rescale_kernel(psum_ref, w1_ref, b1_ref, w2_ref, b2_ref, x_ref, o_ref, *,
                    inv_hw):
    pooled = psum_ref[...][:, :, 0] * inv_hw                       # (1, C) f32
    # The MLP is recomputed per HW tile; it is O(C*Cr) and negligible.
    a = _excite(pooled, w1_ref[...], b1_ref[...], w2_ref[...], b2_ref[...])
    x = x_ref[...]
    o_ref[...] = (x * a[:, :, None].astype(x.dtype)).astype(o_ref.dtype)


def _mca_chunked(x2, w1, b1, w2, b2, *, inv_hw, thw):
    B, C, HWp = x2.shape
    Cr = w1.shape[0]
    n_hw = HWp // thw
    block_bytes = C * thw * jnp.dtype(x2.dtype).itemsize
    vmem = _vmem_limit(block_bytes)

    psum = pl.pallas_call(
        _pool_kernel,
        out_shape=jax.ShapeDtypeStruct((B, C, 1), jnp.float32),
        grid_spec=pltpu.PrefetchScalarGridSpec(
            num_scalar_prefetch=0,
            grid=(B, n_hw),
            in_specs=[pl.BlockSpec((1, C, thw), lambda b, j: (b, 0, j))],
            out_specs=pl.BlockSpec((1, C, 1), lambda b, j: (b, 0, 0)),
        ),
        compiler_params=pltpu.CompilerParams(
            dimension_semantics=("parallel", "arbitrary"),
            vmem_limit_bytes=vmem,
        ),
    )(x2)

    kern = functools.partial(_rescale_kernel, inv_hw=inv_hw)
    return pl.pallas_call(
        kern,
        out_shape=jax.ShapeDtypeStruct((B, C, HWp), x2.dtype),
        grid_spec=pltpu.PrefetchScalarGridSpec(
            num_scalar_prefetch=0,
            grid=(B, n_hw),
            in_specs=[
                pl.BlockSpec((1, C, 1), lambda b, j: (b, 0, 0)),     # pooled sums
                pl.BlockSpec((Cr, C), lambda b, j: (0, 0)),          # w1
                pl.BlockSpec((1, Cr), lambda b, j: (0, 0)),          # b1
                pl.BlockSpec((C, Cr), lambda b, j: (0, 0)),          # w2
                pl.BlockSpec((1, C), lambda b, j: (0, 0)),           # b2
                pl.BlockSpec((1, C, thw), lambda b, j: (b, 0, j)),   # x
            ],
            out_specs=pl.BlockSpec((1, C, thw), lambda b, j: (b, 0, j)),
        ),
        compiler_params=pltpu.CompilerParams(
            dimension_semantics=("parallel", "parallel"),
            vmem_limit_bytes=vmem,
        ),
    )(psum, w1, b1, w2, b2, x2)


# ---------------------------------------------------------------------------
# public wrapper
# ---------------------------------------------------------------------------

def mca_layer(x, w1, b1, w2, b2, *,
              max_fused_block_bytes=8 * 1024 * 1024,
              target_block_bytes=4 * 1024 * 1024,
              chunk_bytes=2 * 1024 * 1024):
    """x: (B, C, H, W) NCHW; w1: (Cr, C); b1: (Cr, 1); w2: (C, Cr); b2: (C, 1)."""
    B, C, H, W = x.shape
    HW = H * W
    Cr = w1.shape[0]
    itemsize = jnp.dtype(x.dtype).itemsize
    inv_hw = 1.0 / HW

    b1r = b1.reshape(1, Cr)
    b2r = b2.reshape(1, C)
    x2 = x.reshape(B, C, HW)

    per_b_bytes_128 = C * _round_up(HW, 128) * itemsize
    if per_b_bytes_128 <= max_fused_block_bytes:
        # ---- fused single-pass path ----
        HWp = _round_up(HW, 128)                       # lane-dense output
        if HWp != HW:
            x2 = jnp.pad(x2, ((0, 0), (0, 0), (0, HWp - HW)))
        tb = _pick_tb(B, C * HWp * itemsize, target_block_bytes)
        out = _mca_fused(x2, w1, b1r, w2, b2r, inv_hw=inv_hw, tb=tb)
    else:
        # ---- chunked two-pass path (bounded VMEM for huge feature maps) ----
        thw = max(128, (chunk_bytes // (C * itemsize)) // 128 * 128)
        thw = min(thw, _round_up(HW, 128))
        HWp = _round_up(HW, thw)
        if HWp != HW:
            x2 = jnp.pad(x2, ((0, 0), (0, 0), (0, HWp - HW)))
        out = _mca_chunked(x2, w1, b1r, w2, b2r, inv_hw=inv_hw, thw=thw)

    return out[:, :, :HW].reshape(B, C, H, W)


def mca_reference(x, w1, b1, w2, b2):
    # Pure-JAX reference matching the PyTorch forward.
    pooled = jnp.mean(x, axis=(2, 3))                        # (B, C)
    h = jnp.maximum(pooled @ w1.T + b1[:, 0], 0.0)           # (B, Cr)
    a = jax.nn.sigmoid(h @ w2.T + b2[:, 0])                  # (B, C)
    return x * a[:, :, None, None]


if __name__ == "__main__":
    # Small shapes consistent with the module: n_feats=32, reduction=16 -> Cr=2
    B, C, H, W = 2, 32, 16, 16
    reduction = 16
    Cr = C // reduction

    key = jax.random.PRNGKey(0)
    k1, k2, k3, k4, kx, kx2 = jax.random.split(key, 6)

    # Deterministic synthetic parameters (Conv2d 1x1 weights flattened to 2D).
    w1 = jax.random.normal(k1, (Cr, C), jnp.float32) * 0.2    # conv_du[0].weight
    b1 = jax.random.normal(k2, (Cr, 1), jnp.float32) * 0.1    # conv_du[0].bias
    w2 = jax.random.normal(k3, (C, Cr), jnp.float32) * 0.2    # conv_du[2].weight
    b2 = jax.random.normal(k4, (C, 1), jnp.float32) * 0.1     # conv_du[2].bias

    x = jax.random.normal(kx, (B, C, H, W), jnp.float32)
    ref = mca_reference(x, w1, b1, w2, b2)

    # Fused single-pass path.
    out = jax.block_until_ready(mca_layer(x, w1, b1, w2, b2))
    assert out.shape == x.shape and out.dtype == x.dtype
    assert jnp.allclose(out, ref, atol=1e-5, rtol=1e-5), "fused path mismatch"

    # Force the chunked two-pass fallback (used for large feature maps).
    out_c = jax.block_until_ready(
        mca_layer(x, w1, b1, w2, b2,
                  max_fused_block_bytes=0, chunk_bytes=16 * 1024))
    assert jnp.allclose(out_c, ref, atol=1e-5, rtol=1e-5), "chunked path mismatch"

    # Spatial size not a multiple of 128 -> exercises lane padding.
    x_odd = jax.random.normal(kx2, (B, C, 9, 13), jnp.float32)
    out_odd = jax.block_until_ready(mca_layer(x_odd, w1, b1, w2, b2))
    ref_odd = mca_reference(x_odd, w1, b1, w2, b2)
    assert jnp.allclose(out_odd, ref_odd, atol=1e-5, rtol=1e-5), "padded path mismatch"

    print("KERNEL_OK")
</pallas_src>

<mosaic_0001>
module attributes {stable_mosaic.version = 11 : i64} {
  func.func @_mca_fused_kernel(%arg0: i32, %arg1: memref<1x32x256xf32, #tpu.memory_space<vmem>>, %arg2: memref<2x32xf32, #tpu.memory_space<vmem>>, %arg3: memref<1x2xf32, #tpu.memory_space<vmem>>, %arg4: memref<32x2xf32, #tpu.memory_space<vmem>>, %arg5: memref<1x32xf32, #tpu.memory_space<vmem>>, %arg6: memref<1x32x256xf32, #tpu.memory_space<vmem>>) attributes {dimension_semantics = [#tpu.dimension_semantics<parallel>], iteration_bounds = array<i64: 2>, scalar_prefetch = 0 : i64, scratch_operands = 0 : i64, tpu.core_type = #tpu.core_type<tc>, window_params = [{transform_indices = @transform_0, window_bounds = array<i64: 1, 32, 256>}, {pipeline_mode = #tpu.pipeline_mode<synchronous>, transform_indices = @transform_1, window_bounds = array<i64: 2, 32>}, {pipeline_mode = #tpu.pipeline_mode<synchronous>, transform_indices = @transform_2, window_bounds = array<i64: 1, 2>}, {pipeline_mode = #tpu.pipeline_mode<synchronous>, transform_indices = @transform_3, window_bounds = array<i64: 32, 2>}, {pipeline_mode = #tpu.pipeline_mode<synchronous>, transform_indices = @transform_4, window_bounds = array<i64: 1, 32>}, {transform_indices = @transform_5, window_bounds = array<i64: 1, 32, 256>}]} {
    %c0 = arith.constant 0 : index
    %c0_0 = arith.constant 0 : index
    %c0_1 = arith.constant 0 : index
    %0 = vector.load %arg1[%c0, %c0_0, %c0_1] : memref<1x32x256xf32, #tpu.memory_space<vmem>>, vector<1x32x256xf32>
    %cst = arith.constant dense<0.000000e+00> : vector<1x32xf32>
    %1 = vector.multi_reduction <add>, %0, %cst [2] : vector<1x32x256xf32> to vector<1x32xf32>
    %cst_2 = arith.constant 3.906250e-03 : f32
    %2 = vector.broadcast %cst_2 : f32 to vector<1x32xf32>
    %3 = arith.mulf %1, %2 : vector<1x32xf32>
    %c0_3 = arith.constant 0 : index
    %c0_4 = arith.constant 0 : index
    %4 = vector.load %arg2[%c0_3, %c0_4] : memref<2x32xf32, #tpu.memory_space<vmem>>, vector<2x32xf32>
    %c0_5 = arith.constant 0 : index
    %c0_6 = arith.constant 0 : index
    %5 = vector.load %arg3[%c0_5, %c0_6] : memref<1x2xf32, #tpu.memory_space<vmem>>, vector<1x2xf32>
    %c0_7 = arith.constant 0 : index
    %c0_8 = arith.constant 0 : index
    %6 = vector.load %arg4[%c0_7, %c0_8] : memref<32x2xf32, #tpu.memory_space<vmem>>, vector<32x2xf32>
    %c0_9 = arith.constant 0 : index
    %c0_10 = arith.constant 0 : index
    %7 = vector.load %arg5[%c0_9, %c0_10] : memref<1x32xf32, #tpu.memory_space<vmem>>, vector<1x32xf32>
    %8 = vector.shape_cast %3 : vector<1x32xf32> to vector<1x1x32xf32>
    %9 = vector.shape_cast %4 : vector<2x32xf32> to vector<1x2x32xf32>
    %10 = vector.broadcast %8 : vector<1x1x32xf32> to vector<1x2x32xf32>
    %11 = arith.mulf %10, %9 : vector<1x2x32xf32>
    %cst_11 = arith.constant dense<0.000000e+00> : vector<1x2xf32>
    %12 = vector.multi_reduction <add>, %11, %cst_11 [2] : vector<1x2x32xf32> to vector<1x2xf32>
    %13 = arith.addf %12, %5 : vector<1x2xf32>
    %cst_12 = arith.constant 0.000000e+00 : f32
    %14 = vector.broadcast %cst_12 : f32 to vector<1x2xf32>
    %15 = arith.maximumf %13, %14 : vector<1x2xf32>
    %16 = vector.shape_cast %15 : vector<1x2xf32> to vector<1x1x2xf32>
    %17 = vector.shape_cast %6 : vector<32x2xf32> to vector<1x32x2xf32>
    %18 = vector.broadcast %16 : vector<1x1x2xf32> to vector<1x32x2xf32>
    %19 = arith.mulf %18, %17 : vector<1x32x2xf32>
    %cst_13 = arith.constant dense<0.000000e+00> : vector<1x32xf32>
    %20 = vector.multi_reduction <add>, %19, %cst_13 [2] : vector<1x32x2xf32> to vector<1x32xf32>
    %21 = arith.addf %20, %7 : vector<1x32xf32>
    %22 = arith.negf %21 : vector<1x32xf32>
    %23 = math.exp %22 : vector<1x32xf32>
    %cst_14 = arith.constant 1.000000e+00 : f32
    %24 = vector.broadcast %cst_14 : f32 to vector<1x32xf32>
    %25 = arith.addf %24, %23 : vector<1x32xf32>
    %26 = arith.divf %24, %25 : vector<1x32xf32>
    %27 = vector.shape_cast %26 : vector<1x32xf32> to vector<1x32x1xf32>
    %28 = vector.broadcast %27 : vector<1x32x1xf32> to vector<1x32x256xf32>
    %29 = arith.mulf %0, %28 : vector<1x32x256xf32>
    %c0_15 = arith.constant 0 : index
    %c0_16 = arith.constant 0 : index
    %c0_17 = arith.constant 0 : index
    %30 = vector.load %arg6[%c0_15, %c0_16, %c0_17] : memref<1x32x256xf32, #tpu.memory_space<vmem>>, vector<1x32x256xf32>
    tpu.vector_store %arg6[%c0_15, %c0_16, %c0_17], %29 {strides = array<i32>} : memref<1x32x256xf32, #tpu.memory_space<vmem>>, vector<1x32x256xf32>,
    return
  }
  func.func @transform_0(%arg0: i32) -> (i32, i32, i32) {
    %c0_i32 = arith.constant 0 : i32
    %c0_i32_0 = arith.constant 0 : i32
    %c0_i32_1 = arith.constant 0 : i32
    return %arg0, %c0_i32, %c0_i32_0 : i32, i32, i32
  }
  func.func @transform_1(%arg0: i32) -> (i32, i32) {
    %c0_i32 = arith.constant 0 : i32
    %c0_i32_0 = arith.constant 0 : i32
    %c0_i32_1 = arith.constant 0 : i32
    return %c0_i32, %c0_i32_0 : i32, i32
  }
  func.func @transform_2(%arg0: i32) -> (i32, i32) {
    %c0_i32 = arith.constant 0 : i32
    %c0_i32_0 = arith.constant 0 : i32
    %c0_i32_1 = arith.constant 0 : i32
    return %c0_i32, %c0_i32_0 : i32, i32
  }
  func.func @transform_3(%arg0: i32) -> (i32, i32) {
    %c0_i32 = arith.constant 0 : i32
    %c0_i32_0 = arith.constant 0 : i32
    %c0_i32_1 = arith.constant 0 : i32
    return %c0_i32, %c0_i32_0 : i32, i32
  }
  func.func @transform_4(%arg0: i32) -> (i32, i32) {
    %c0_i32 = arith.constant 0 : i32
    %c0_i32_0 = arith.constant 0 : i32
    %c0_i32_1 = arith.constant 0 : i32
    return %c0_i32, %c0_i32_0 : i32, i32
  }
  func.func @transform_5(%arg0: i32) -> (i32, i32, i32) {
    %c0_i32 = arith.constant 0 : i32
    %c0_i32_0 = arith.constant 0 : i32
    %c0_i32_1 = arith.constant 0 : i32
    return %arg0, %c0_i32, %c0_i32_0 : i32, i32, i32
  }
}

</mosaic_0001>

<llo_original>
// kernel: tpu_custom_call.1
$region0: #{tpu_custom_call.1}
  #allocation0 [shape = 'u32[]', space=smem, size = 0x4, offset = 0x4, fixed_abs, tag = 'smem constant byte address 0x4 - core index']
  #allocation1 [shape = 'u32[72,128]{1,0:T(1,128)}', space=vmem, size = 0x9000, scoped, tag = 'internal scratch']
  %s0 = inlined_call_operand.hbm [shape: f32[2,32,256], index: 0, kind: input, shape index: {}]
  %s1 = inlined_call_operand.vmem [shape: f32[2,32], index: 1, kind: input, shape index: {}]
  %s2 = inlined_call_operand.vmem [shape: f32[1,2], index: 2, kind: input, shape index: {}]
  %s3 = inlined_call_operand.vmem [shape: f32[32,2], index: 3, kind: input, shape index: {}]
  %s4 = inlined_call_operand.vmem [shape: f32[1,32], index: 4, kind: input, shape index: {}]
  %s5 = inlined_call_operand.hbm [shape: f32[2,32,256], index: 5, kind: output, shape index: {}]
  %s6 = sld [smem:[#allocation0]]
  $region57: #{tpu_custom_call.1} parent=0
    _
  %s8 = ssub.s32 1, %s6
  %s9 = scalar_select 0, %s8, %s6
  $region1: #{tpu_custom_call.1} parent=0
    #allocation2 [shape = 'u8[65536]{0}', space=vmem, size = 0x10000, scoped, tag = 'input window, operand 0']
    #allocation3 [shape = 's32[2]{0}', space=sflag, size = 0x8, scoped, tag = 'scoped memory for tpu_custom_call.1']
    #allocation4 [shape = 's32[2]{0}', space=sflag, size = 0x8, scoped, tag = 'scoped memory for tpu_custom_call.1']
    #allocation5 [shape = 'u8[65536]{0}', space=vmem, size = 0x10000, scoped, tag = 'output window, operand 0']
    %10 = vsyncpa [#allocation3], 0
    %s11 = scalar_lea.sflag [#allocation3], 1
    %12 = vsyncpa %s11, 0
    %13 = vsyncpa [#allocation4], 0
    %s14 = scalar_lea.sflag [#allocation4], 1
    %15 = vsyncpa %s14, 0
    loop: start=0, step=1, limit=4
    $region2: #{tpu_custom_call.1} parent=1 // loop_pre_header
      _
    $region3: #{tpu_custom_call.1} parent=1 // loop_header
      %s17 = sphi 0, %s21
      %p18 = scmp.ge.s32.totalorder %s17, 4
      %s27 = sphi 0, %s29
      %s30 = sphi 0, %s27
      %s31 = sphi 0, %s30
      %s47 = sphi 0, %s31
      %s51 = sphi 0, %s51
      %s53 = sphi 0, %s51
      %s54 = sphi 0, %s53
      %s68 = sphi 0, %s54
      %s72 = sphi 0, %s72
      %s74 = sphi 0, %s72
      %s75 = sphi 0, %s74
      %s89 = sphi 0, %s75
      %s93 = sphi 0, %s93
      %s95 = sphi 0, %s93
      %s96 = sphi 0, %s95
      %s110 = sphi 0, %s96
      %s114 = sphi 0, %s114
      %s116 = sphi 0, %s114
      %s117 = sphi 0, %s116
      %s131 = sphi 0, %s117
      %s137 = sphi 0, %s139
      %s140 = sphi 0, %s137
      %s141 = sphi 0, %s140
      %s157 = sphi 0, %s141
    $region4: #{tpu_custom_call.1} parent=1 // loop_header_branch
      %20 = sbr.rel (%p18) target = $region8
    $region5: #{tpu_custom_call.1} parent=1 // loop_body
      %s22 = ssub.s32 %s17, 1
      %s23 = ssub.s32 %s17, 2
      %s24 = sadd.s32 %s17, 1
      %s25 = ssub.s32 %s17, %s24
      %p26 = scmp.eq.s32.totalorder %s25, 0
      %s28 = sadd.s32 %s27, 1
      %s29 = scalar_select %p26, %s27, %s28
      %p32 = pneg %p26
      %p33 = scmp.eq.s32.totalorder %s17, 1
      %p34 = por %p32, %p33
      %p35 = scmp.ne.s32.totalorder %s27, %s30
      %p36 = scmp.eq.s32.totalorder %s17, 0
      %p37 = por %p35, %p36
      %p38 = scmp.ne.s32.totalorder %s27, %s30
      %p39 = scmp.eq.s32.totalorder %s22, 1
      %p40 = por %p38, %p39
      %p41 = scmp.ne.s32.totalorder %s30, %s31
      %p42 = scmp.eq.s32.totalorder %s22, 0
      %p43 = por %p41, %p42
      %p44 = scmp.ne.s32.totalorder %s30, %s31
      %p45 = scmp.eq.s32.totalorder %s23, 1
      %p46 = por %p44, %p45
      %p48 = scmp.ne.s32.totalorder %s31, %s47
      %p49 = scmp.eq.s32.totalorder %s23, 0
      %p50 = por %p48, %p49
      %s52 = sadd.s32 %s51, 1
      %p55 = scmp.eq.s32.totalorder %s17, 1
      %p56 = scmp.ne.s32.totalorder %s51, %s53
      %p57 = scmp.eq.s32.totalorder %s17, 0
      %p58 = por %p56, %p57
      %p59 = scmp.ne.s32.totalorder %s51, %s53
      %p60 = scmp.eq.s32.totalorder %s22, 1
      %p61 = por %p59, %p60
      %p62 = scmp.ne.s32.totalorder %s53, %s54
      %p63 = scmp.eq.s32.totalorder %s22, 0
      %p64 = por %p62, %p63
      %p65 = scmp.ne.s32.totalorder %s53, %s54
      %p66 = scmp.eq.s32.totalorder %s23, 1
      %p67 = por %p65, %p66
      %p69 = scmp.ne.s32.totalorder %s54, %s68
      %p70 = scmp.eq.s32.totalorder %s23, 0
      %p71 = por %p69, %p70
      %s73 = sadd.s32 %s72, 1
      %p76 = scmp.eq.s32.totalorder %s17, 1
      %p77 = scmp.ne.s32.totalorder %s72, %s74
      %p78 = scmp.eq.s32.totalorder %s17, 0
      %p79 = por %p77, %p78
      %p80 = scmp.ne.s32.totalorder %s72, %s74
      %p81 = scmp.eq.s32.totalorder %s22, 1
      %p82 = por %p80, %p81
      %p83 = scmp.ne.s32.totalorder %s74, %s75
      %p84 = scmp.eq.s32.totalorder %s22, 0
      %p85 = por %p83, %p84
      %p86 = scmp.ne.s32.totalorder %s74, %s75
      %p87 = scmp.eq.s32.totalorder %s23, 1
      %p88 = por %p86, %p87
      %p90 = scmp.ne.s32.totalorder %s75, %s89
      %p91 = scmp.eq.s32.totalorder %s23, 0
      %p92 = por %p90, %p91
      %s94 = sadd.s32 %s93, 1
      %p97 = scmp.eq.s32.totalorder %s17, 1
      %p98 = scmp.ne.s32.totalorder %s93, %s95
      %p99 = scmp.eq.s32.totalorder %s17, 0
      %p100 = por %p98, %p99
      %p101 = scmp.ne.s32.totalorder %s93, %s95
      %p102 = scmp.eq.s32.totalorder %s22, 1
      %p103 = por %p101, %p102
      %p104 = scmp.ne.s32.totalorder %s95, %s96
      %p105 = scmp.eq.s32.totalorder %s22, 0
      %p106 = por %p104, %p105
      %p107 = scmp.ne.s32.totalorder %s95, %s96
      %p108 = scmp.eq.s32.totalorder %s23, 1
      %p109 = por %p107, %p108
      %p111 = scmp.ne.s32.totalorder %s96, %s110
      %p112 = scmp.eq.s32.totalorder %s23, 0
      %p113 = por %p111, %p112
      %s115 = sadd.s32 %s114, 1
      %p118 = scmp.eq.s32.totalorder %s17, 1
      %p119 = scmp.ne.s32.totalorder %s114, %s116
      %p120 = scmp.eq.s32.totalorder %s17, 0
      %p121 = por %p119, %p120
      %p122 = scmp.ne.s32.totalorder %s114, %s116
      %p123 = scmp.eq.s32.totalorder %s22, 1
      %p124 = por %p122, %p123
      %p125 = scmp.ne.s32.totalorder %s116, %s117
      %p126 = scmp.eq.s32.totalorder %s22, 0
      %p127 = por %p125, %p126
      %p128 = scmp.ne.s32.totalorder %s116, %s117
      %p129 = scmp.eq.s32.totalorder %s23, 1
      %p130 = por %p128, %p129
      %p132 = scmp.ne.s32.totalorder %s117, %s131
      %p133 = scmp.eq.s32.totalorder %s23, 0
      %p134 = por %p132, %p133
      %s135 = ssub.s32 %s17, %s24
      %p136 = scmp.eq.s32.totalorder %s135, 0
      %s138 = sadd.s32 %s137, 1
      %s139 = scalar_select %p136, %s137, %s138
      %p142 = pneg %p136
      %p143 = scmp.eq.s32.totalorder %s17, 1
      %p144 = por %p142, %p143
      %p145 = scmp.ne.s32.totalorder %s137, %s140
      %p146 = scmp.eq.s32.totalorder %s17, 0
      %p147 = por %p145, %p146
      %p148 = scmp.ne.s32.totalorder %s137, %s140
      %p149 = scmp.eq.s32.totalorder %s22, 1
      %p150 = por %p148, %p149
      %p151 = scmp.ne.s32.totalorder %s140, %s141
      %p152 = scmp.eq.s32.totalorder %s22, 0
      %p153 = por %p151, %p152
      %p154 = scmp.ne.s32.totalorder %s140, %s141
      %p155 = scmp.eq.s32.totalorder %s23, 1
      %p156 = por %p154, %p155
      %p158 = scmp.ne.s32.totalorder %s141, %s157
      %p159 = scmp.eq.s32.totalorder %s23, 0
      %p160 = por %p158, %p159
      %p161 = scmp.le.s32.totalorder 1, %s17
      %p162 = scmp.lt.s32.totalorder %s17, 3
      %p163 = pnand %p161, %p162
      %p164 = pneg %p163
      // Predicated region
      $region9: #{tpu_custom_call.1} parent=5 // pred_check
        _
      $region10: #{tpu_custom_call.1} parent=5 // pred_check_branch
        %166 = sbr.rel (%p163) target = $region12
      $region11: #{tpu_custom_call.1} parent=5 // pred_region
        %s167 = ssub.s32 %s17, 1
        // Predicated region
        $region13: #{tpu_custom_call.1} parent=11 // pred_check
          %p168 = pneg %p64
        $region14: #{tpu_custom_call.1} parent=11 // pred_check_branch
          %170 = sbr.rel (%p168) target = $region16
        $region15: #{tpu_custom_call.1} parent=11 // pred_region
          _
        $region16: #{tpu_custom_call.1} parent=11 // pred_fallthru
          _
        // Predicated region
        $region17: #{tpu_custom_call.1} parent=11 // pred_check
          %p171 = pneg %p85
        $region18: #{tpu_custom_call.1} parent=11 // pred_check_branch
          %173 = sbr.rel (%p171) target = $region20
        $region19: #{tpu_custom_call.1} parent=11 // pred_region
          _
        $region20: #{tpu_custom_call.1} parent=11 // pred_fallthru
          _
        // Predicated region
        $region21: #{tpu_custom_call.1} parent=11 // pred_check
          %p174 = pneg %p106
        $region22: #{tpu_custom_call.1} parent=11 // pred_check_branch
          %176 = sbr.rel (%p174) target = $region24
        $region23: #{tpu_custom_call.1} parent=11 // pred_region
          _
        $region24: #{tpu_custom_call.1} parent=11 // pred_fallthru
          _
        // Predicated region
        $region25: #{tpu_custom_call.1} parent=11 // pred_check
          %p177 = pneg %p127
        $region26: #{tpu_custom_call.1} parent=11 // pred_check_branch
          %179 = sbr.rel (%p177) target = $region28
        $region27: #{tpu_custom_call.1} parent=11 // pred_region
          _
        $region28: #{tpu_custom_call.1} parent=11 // pred_fallthru
          _
      $region12: #{tpu_custom_call.1} parent=5 // pred_fallthru
        _
      %p180 = scmp.lt.s32.totalorder %s17, 2
      // Predicated region
      $region29: #{tpu_custom_call.1} parent=5 // pred_check
        %p181 = pneg %p180
      $region30: #{tpu_custom_call.1} parent=5 // pred_check_branch
        %183 = sbr.rel (%p181) target = $region32
      $region31: #{tpu_custom_call.1} parent=5 // pred_region
        // Predicated region
        $region33: #{tpu_custom_call.1} parent=31 // pred_check
          %p184 = pneg %p37
        $region34: #{tpu_custom_call.1} parent=31 // pred_check_branch
          %186 = sbr.rel (%p184) target = $region36
        $region35: #{tpu_custom_call.1} parent=31 // pred_region
          %s187 = sand.u32 %s27, 1
          %s188 = scalar_lea.sflag [#allocation3], %s187
          %s189 = sand.u32 %s27, 1
          %s190 = smul.addr %s189, 64
          %s191 = scalar_lea.vmem [#allocation2], %s190
          %193 = vsyncadd %s188, 0
          %s194 = smul.addr %s17, 8
          %s195 = smul.addr %s194, 8
          %s196 = scalar_lea.hbm %s0, %s195
          %s197 = sshll.u32 %s196, 4
          %s198 = int_to_ptr.hbm [resolvable:$true] %s197
          %s199 = sshll.u32 %s191, 4
          %s200 = int_to_ptr.vmem [resolvable:$true] %s199
          %205 = dma.hbm_to_vmem [thread:$0]  %s198, 1024, %s200, %s188, 256, 256, 16
        $region36: #{tpu_custom_call.1} parent=31 // pred_fallthru
          _
      $region32: #{tpu_custom_call.1} parent=5 // pred_fallthru
        _
      %p206 = scmp.le.s32.totalorder 1, %s17
      %p207 = scmp.lt.s32.totalorder %s17, 3
      %p208 = pnand %p206, %p207
      %p209 = pneg %p208
      // Predicated region
      $region37: #{tpu_custom_call.1} parent=5 // pred_check
        _
      $region38: #{tpu_custom_call.1} parent=5 // pred_check_branch
        %211 = sbr.rel (%p208) target = $region40
      $region39: #{tpu_custom_call.1} parent=5 // pred_region
        %s212 = ssub.s32 %s17, 1
        %s213 = sand.u32 %s30, 1
        %s214 = scalar_lea.sflag [#allocation3], %s213
        %s215 = sand.u32 %s30, 1
        %s216 = smul.addr %s215, 64
        %s217 = scalar_lea.vmem [#allocation2], %s216
        // Predicated region
        $region41: #{tpu_custom_call.1} parent=39 // pred_check
          %p218 = pneg %p43
        $region42: #{tpu_custom_call.1} parent=39 // pred_check_branch
          %220 = sbr.rel (%p218) target = $region44
        $region43: #{tpu_custom_call.1} parent=39 // pred_region
          %222 = dma.done %s214, 1024
        $region44: #{tpu_custom_call.1} parent=39 // pred_fallthru
          _
        %s223 = sand.u32 %s30, 1
        %s224 = scalar_lea.sflag [#allocation3], %s223
        %s225 = sand.u32 %s30, 1
        %s226 = smul.addr %s225, 64
        %s227 = scalar_lea.vmem [#allocation2], %s226
        %p228 = pneg %p43
        %p229 = pneg %p40
        %p230 = pneg %p64
        %p231 = pneg %p61
        %p232 = pneg %p85
        %p233 = pneg %p82
        %p234 = pneg %p106
        %p235 = pneg %p103
        %p236 = pneg %p127
        %p237 = pneg %p124
        %p238 = pneg %p153
        %p239 = pneg %p150
        %s240 = sand.u32 %s140, 1
        %s241 = scalar_lea.sflag [#allocation4], %s240
        %s242 = sand.u32 %s140, 1
        %s243 = smul.addr %s242, 64
        %s244 = scalar_lea.vmem [#allocation5], %s243
        %v245 = vld [vmem:[%s217] sm:$0xff]
        %v246 = vld [vmem:[%s217 + $0x8] sm:$0xff]
        %v247 = vld [vmem:[%s217 + $0x10] sm:$0xff]
        %v248 = vld [vmem:[%s217 + $0x18] sm:$0xff]
        %v249 = vld [vmem:[%s217 + $0x20] sm:$0xff]
        %v250 = vld [vmem:[%s217 + $0x28] sm:$0xff]
        %v251 = vld [vmem:[%s217 + $0x30] sm:$0xff]
        %v252 = vld [vmem:[%s217 + $0x38] sm:$0xff]
        %v253 = vadd.f32 %v245, %v246
        %254 = vadd.xlane.f32.xlu0 %v253
        %v255 = vpop.xlane.xlu0 %254
        %v256 = vadd.f32 %v247, %v248
        %257 = vadd.xlane.f32.xlu0 %v256
        %v258 = vpop.xlane.xlu0 %257
        %v259 = vadd.f32 %v249, %v250
        %260 = vadd.xlane.f32.xlu0 %v259
        %v261 = vpop.xlane.xlu0 %260
        %v262 = vadd.f32 %v251, %v252
        %263 = vadd.xlane.f32.xlu0 %v262
        %v264 = vpop.xlane.xlu0 %263
        %v265 = vmul.f32 %v255, 0.00390625
        %v266 = vmul.f32 %v258, 0.00390625
        %v267 = vmul.f32 %v261, 0.00390625
        %v268 = vmul.f32 %v264, 0.00390625
        %v269 = vld [vmem:[%s1] sm:$0x3]
        %v270 = vld [vmem:[%s2] sm:$0x1]
        %v271 = vld [vmem:[%s3] sm:$0xff]
        %v272 = vld [vmem:[%s3 + $0x8] sm:$0xff]
        %v273 = vld [vmem:[%s3 + $0x10] sm:$0xff]
        %v274 = vld [vmem:[%s3 + $0x18] sm:$0xff]
        %v275 = vld [vmem:[%s4] sm:$0x1]
        %v277 = vperm.slane %v269, 0
        %v278 = vlaneseq
        %v279 = vshrl.u32 %v278, 7
        %281 = vset.pattern.permute.xlu0 %v279
        %282 = vperm.xlu0 %281, %v277
        %v283 = vpop.permute.xlu0 %282
        %v284 = vlaneseq
        %v285 = vshrl.u32 %v284, 7
        %v286 = vadd.s32 %v285, 8
        %287 = vset.pattern.permute.xlu0 %v286
        %288 = vperm.xlu0 %287, %v277
        %v289 = vpop.permute.xlu0 %288
        %v290 = vlaneseq
        %v291 = vshrl.u32 %v290, 7
        %v292 = vadd.s32 %v291, 16
        %293 = vset.pattern.permute.xlu0 %v292
        %294 = vperm.xlu0 %293, %v277
        %v295 = vpop.permute.xlu0 %294
        %v296 = vlaneseq
        %v297 = vshrl.u32 %v296, 7
        %v298 = vadd.s32 %v297, 24
        %299 = vset.pattern.permute.xlu0 %v298
        %300 = vperm.xlu0 %299, %v277
        %v301 = vpop.permute.xlu0 %300
        %v302 = vperm.slane %v269, 1
        %v303 = vlaneseq
        %v304 = vshrl.u32 %v303, 7
        %306 = vset.pattern.permute.xlu0 %v304
        %307 = vperm.xlu0 %306, %v302
        %v308 = vpop.permute.xlu0 %307
        %v309 = vlaneseq
        %v310 = vshrl.u32 %v309, 7
        %v311 = vadd.s32 %v310, 8
        %312 = vset.pattern.permute.xlu0 %v311
        %313 = vperm.xlu0 %312, %v302
        %v314 = vpop.permute.xlu0 %313
        %v315 = vlaneseq
        %v316 = vshrl.u32 %v315, 7
        %v317 = vadd.s32 %v316, 16
        %318 = vset.pattern.permute.xlu0 %v317
        %319 = vperm.xlu0 %318, %v302
        %v320 = vpop.permute.xlu0 %319
        %v321 = vlaneseq
        %v322 = vshrl.u32 %v321, 7
        %v323 = vadd.s32 %v322, 24
        %324 = vset.pattern.permute.xlu0 %v323
        %325 = vperm.xlu0 %324, %v302
        %v326 = vpop.permute.xlu0 %325
        %v335 = vmul.f32 %v265, %v283
        %v336 = vmul.f32 %v266, %v289
        %v337 = vmul.f32 %v267, %v295
        %v338 = vmul.f32 %v268, %v301
        %v339 = vmul.f32 %v265, %v308
        %v340 = vmul.f32 %v266, %v314
        %v341 = vmul.f32 %v267, %v320
        %v342 = vmul.f32 %v268, %v326
        %351 = vset.pattern.permute.xlu0 0
        %352 = vperm.xlu0 %351, %v335
        %v353 = vpop.permute.xlu0 %352
        %354 = vset.pattern.permute.xlu0 0
        %355 = vperm.xlu0 %354, %v336
        %v356 = vpop.permute.xlu0 %355
        %357 = vset.pattern.permute.xlu0 0
        %358 = vperm.xlu0 %357, %v337
        %v359 = vpop.permute.xlu0 %358
        %360 = vset.pattern.permute.xlu0 0
        %361 = vperm.xlu0 %360, %v338
        %v362 = vpop.permute.xlu0 %361
        %363 = vset.pattern.permute.xlu0 0
        %364 = vperm.xlu0 %363, %v339
        %v365 = vpop.permute.xlu0 %364
        %366 = vset.pattern.permute.xlu0 0
        %367 = vperm.xlu0 %366, %v340
        %v368 = vpop.permute.xlu0 %367
        %369 = vset.pattern.permute.xlu0 0
        %370 = vperm.xlu0 %369, %v341
        %v371 = vpop.permute.xlu0 %370
        %372 = vset.pattern.permute.xlu0 0
        %373 = vperm.xlu0 %372, %v342
        %v374 = vpop.permute.xlu0 %373
        %v375 = vlaneseq
        %v376 = vand.u32 %v375, 127
        %v377 = vperm.slane %v353, %v376
        %v378 = vadd.s32 %v376, 4294967288
        %v379 = vperm.slane %v356, %v378
        %vm380 = vcmask 130112
        %v381 = vsel %vm380, %v379, %v377
        %v382 = vadd.s32 %v376, 4294967280
        %v383 = vperm.slane %v359, %v382
        %vm384 = vcmask 195712
        %v385 = vsel %vm384, %v383, %v381
        %v386 = vadd.s32 %v376, 4294967272
        %v387 = vperm.slane %v362, %v386
        %vm388 = vcmask 261312
        %v389 = vsel %vm388, %v387, %v385
        %v390 = vperm.slane %v365, %v376
        %v391 = vperm.slane %v368, %v378
        %v392 = vsel %vm380, %v391, %v390
        %v393 = vperm.slane %v371, %v382
        %v394 = vsel %vm384, %v393, %v392
        %v395 = vperm.slane %v374, %v386
        %v396 = vsel %vm388, %v395, %v394
        %vm397 = vcmask 1041409
        %v398 = vsel %vm397, %v396, %v389
        %vm400 = vcmask 254976
        %v401 = vsel %vm400, %v398, 0.0
        %402 = vadd.xlane.f32.xlu0 %v401
        %v403 = vpop.xlane.xlu0 %402
        %v405 = vperm.slane %v270, 0
        %v406 = vlaneseq
        %v407 = vshrl.u32 %v406, 7
        %409 = vset.pattern.permute.xlu0 %v407
        %410 = vperm.xlu0 %409, %v405
        %v411 = vpop.permute.xlu0 %410
        %v413 = vadd.f32 %v403, %v411
        %v414 = vmax.f32 %v413, 0.0
        %v419 = vperm.slane %v271, 0
        %v420 = vlaneseq
        %v421 = vshrl.u32 %v420, 7
        %423 = vset.pattern.permute.xlu0 %v421
        %424 = vperm.xlu0 %423, %v419
        %v425 = vpop.permute.xlu0 %424
        %v426 = vperm.slane %v271, 1
        %v427 = vlaneseq
        %v428 = vshrl.u32 %v427, 7
        %430 = vset.pattern.permute.xlu0 %v428
        %431 = vperm.xlu0 %430, %v426
        %v432 = vpop.permute.xlu0 %431
        %v433 = vperm.slane %v271, 2
        %v434 = vlaneseq
        %v435 = vshrl.u32 %v434, 7
        %437 = vset.pattern.permute.xlu0 %v435
        %438 = vperm.xlu0 %437, %v433
        %v439 = vpop.permute.xlu0 %438
        %v440 = vperm.slane %v271, 3
        %v441 = vlaneseq
        %v442 = vshrl.u32 %v441, 7
        %444 = vset.pattern.permute.xlu0 %v442
        %445 = vperm.xlu0 %444, %v440
        %v446 = vpop.permute.xlu0 %445
        %v447 = vperm.slane %v271, 4
        %v448 = vlaneseq
        %v449 = vshrl.u32 %v448, 7
        %451 = vset.pattern.permute.xlu0 %v449
        %452 = vperm.xlu0 %451, %v447
        %v453 = vpop.permute.xlu0 %452
        %v454 = vperm.slane %v271, 5
        %v455 = vlaneseq
        %v456 = vshrl.u32 %v455, 7
        %458 = vset.pattern.permute.xlu0 %v456
        %459 = vperm.xlu0 %458, %v454
        %v460 = vpop.permute.xlu0 %459
        %v461 = vperm.slane %v271, 6
        %v462 = vlaneseq
        %v463 = vshrl.u32 %v462, 7
        %465 = vset.pattern.permute.xlu0 %v463
        %466 = vperm.xlu0 %465, %v461
        %v467 = vpop.permute.xlu0 %466
        %v468 = vperm.slane %v271, 7
        %v469 = vlaneseq
        %v470 = vshrl.u32 %v469, 7
        %472 = vset.pattern.permute.xlu0 %v470
        %473 = vperm.xlu0 %472, %v468
        %v474 = vpop.permute.xlu0 %473
        %v475 = vperm.slane %v272, 0
        %v476 = vlaneseq
        %v477 = vshrl.u32 %v476, 7
        %479 = vset.pattern.permute.xlu0 %v477
        %480 = vperm.xlu0 %479, %v475
        %v481 = vpop.permute.xlu0 %480
        %v482 = vperm.slane %v272, 1
        %v483 = vlaneseq
        %v484 = vshrl.u32 %v483, 7
        %486 = vset.pattern.permute.xlu0 %v484
        %487 = vperm.xlu0 %486, %v482
        %v488 = vpop.permute.xlu0 %487
        %v489 = vperm.slane %v272, 2
        %v490 = vlaneseq
        %v491 = vshrl.u32 %v490, 7
        %493 = vset.pattern.permute.xlu0 %v491
        %494 = vperm.xlu0 %493, %v489
        %v495 = vpop.permute.xlu0 %494
        %v496 = vperm.slane %v272, 3
        %v497 = vlaneseq
        %v498 = vshrl.u32 %v497, 7
        %500 = vset.pattern.permute.xlu0 %v498
        %501 = vperm.xlu0 %500, %v496
        %v502 = vpop.permute.xlu0 %501
        %v503 = vperm.slane %v272, 4
        %v504 = vlaneseq
        %v505 = vshrl.u32 %v504, 7
        %507 = vset.pattern.permute.xlu0 %v505
        %508 = vperm.xlu0 %507, %v503
        %v509 = vpop.permute.xlu0 %508
        %v510 = vperm.slane %v272, 5
        %v511 = vlaneseq
        %v512 = vshrl.u32 %v511, 7
        %514 = vset.pattern.permute.xlu0 %v512
        %515 = vperm.xlu0 %514, %v510
        %v516 = vpop.permute.xlu0 %515
        %v517 = vperm.slane %v272, 6
        %v518 = vlaneseq
        %v519 = vshrl.u32 %v518, 7
        %521 = vset.pattern.permute.xlu0 %v519
        %522 = vperm.xlu0 %521, %v517
        %v523 = vpop.permute.xlu0 %522
        %v524 = vperm.slane %v272, 7
        %v525 = vlaneseq
        %v526 = vshrl.u32 %v525, 7
        %528 = vset.pattern.permute.xlu0 %v526
        %529 = vperm.xlu0 %528, %v524
        %v530 = vpop.permute.xlu0 %529
        %v531 = vperm.slane %v273, 0
        %v532 = vlaneseq
        %v533 = vshrl.u32 %v532, 7
        %535 = vset.pattern.permute.xlu0 %v533
        %536 = vperm.xlu0 %535, %v531
        %v537 = vpop.permute.xlu0 %536
        %v538 = vperm.slane %v273, 1
        %v539 = vlaneseq
        %v540 = vshrl.u32 %v539, 7
        %542 = vset.pattern.permute.xlu0 %v540
        %543 = vperm.xlu0 %542, %v538
        %v544 = vpop.permute.xlu0 %543
        %v545 = vperm.slane %v273, 2
        %v546 = vlaneseq
        %v547 = vshrl.u32 %v546, 7
        %549 = vset.pattern.permute.xlu0 %v547
        %550 = vperm.xlu0 %549, %v545
        %v551 = vpop.permute.xlu0 %550
        %v552 = vperm.slane %v273, 3
        %v553 = vlaneseq
        %v554 = vshrl.u32 %v553, 7
        %556 = vset.pattern.permute.xlu0 %v554
        %557 = vperm.xlu0 %556, %v552
        %v558 = vpop.permute.xlu0 %557
        %v559 = vperm.slane %v273, 4
        %v560 = vlaneseq
        %v561 = vshrl.u32 %v560, 7
        %563 = vset.pattern.permute.xlu0 %v561
        %564 = vperm.xlu0 %563, %v559
        %v565 = vpop.permute.xlu0 %564
        %v566 = vperm.slane %v273, 5
        %v567 = vlaneseq
        %v568 = vshrl.u32 %v567, 7
        %570 = vset.pattern.permute.xlu0 %v568
        %571 = vperm.xlu0 %570, %v566
        %v572 = vpop.permute.xlu0 %571
        %v573 = vperm.slane %v273, 6
        %v574 = vlaneseq
        %v575 = vshrl.u32 %v574, 7
        %577 = vset.pattern.permute.xlu0 %v575
        %578 = vperm.xlu0 %577, %v573
        %v579 = vpop.permute.xlu0 %578
        %v580 = vperm.slane %v273, 7
        %v581 = vlaneseq
        %v582 = vshrl.u32 %v581, 7
        %584 = vset.pattern.permute.xlu0 %v582
        %585 = vperm.xlu0 %584, %v580
        %v586 = vpop.permute.xlu0 %585
        %v587 = vperm.slane %v274, 0
        %v588 = vlaneseq
        %v589 = vshrl.u32 %v588, 7
        %591 = vset.pattern.permute.xlu0 %v589
        %592 = vperm.xlu0 %591, %v587
        %v593 = vpop.permute.xlu0 %592
        %v594 = vperm.slane %v274, 1
        %v595 = vlaneseq
        %v596 = vshrl.u32 %v595, 7
        %598 = vset.pattern.permute.xlu0 %v596
        %599 = vperm.xlu0 %598, %v594
        %v600 = vpop.permute.xlu0 %599
        %v601 = vperm.slane %v274, 2
        %v602 = vlaneseq
        %v603 = vshrl.u32 %v602, 7
        %605 = vset.pattern.permute.xlu0 %v603
        %606 = vperm.xlu0 %605, %v601
        %v607 = vpop.permute.xlu0 %606
        %v608 = vperm.slane %v274, 3
        %v609 = vlaneseq
        %v610 = vshrl.u32 %v609, 7
        %612 = vset.pattern.permute.xlu0 %v610
        %613 = vperm.xlu0 %612, %v608
        %v614 = vpop.permute.xlu0 %613
        %v615 = vperm.slane %v274, 4
        %v616 = vlaneseq
        %v617 = vshrl.u32 %v616, 7
        %619 = vset.pattern.permute.xlu0 %v617
        %620 = vperm.xlu0 %619, %v615
        %v621 = vpop.permute.xlu0 %620
        %v622 = vperm.slane %v274, 5
        %v623 = vlaneseq
        %v624 = vshrl.u32 %v623, 7
        %626 = vset.pattern.permute.xlu0 %v624
        %627 = vperm.xlu0 %626, %v622
        %v628 = vpop.permute.xlu0 %627
        %v629 = vperm.slane %v274, 6
        %v630 = vlaneseq
        %v631 = vshrl.u32 %v630, 7
        %633 = vset.pattern.permute.xlu0 %v631
        %634 = vperm.xlu0 %633, %v629
        %v635 = vpop.permute.xlu0 %634
        %v636 = vperm.slane %v274, 7
        %v637 = vlaneseq
        %v638 = vshrl.u32 %v637, 7
        %640 = vset.pattern.permute.xlu0 %v638
        %641 = vperm.xlu0 %640, %v636
        %v642 = vpop.permute.xlu0 %641
        %v675 = vmul.f32 %v414, %v425
        %v676 = vmul.f32 %v414, %v432
        %v677 = vmul.f32 %v414, %v439
        %v678 = vmul.f32 %v414, %v446
        %v679 = vmul.f32 %v414, %v453
        %v680 = vmul.f32 %v414, %v460
        %v681 = vmul.f32 %v414, %v467
        %v682 = vmul.f32 %v414, %v474
        %v683 = vmul.f32 %v414, %v481
        %v684 = vmul.f32 %v414, %v488
        %v685 = vmul.f32 %v414, %v495
        %v686 = vmul.f32 %v414, %v502
        %v687 = vmul.f32 %v414, %v509
        %v688 = vmul.f32 %v414, %v516
        %v689 = vmul.f32 %v414, %v523
        %v690 = vmul.f32 %v414, %v530
        %v691 = vmul.f32 %v414, %v537
        %v692 = vmul.f32 %v414, %v544
        %v693 = vmul.f32 %v414, %v551
        %v694 = vmul.f32 %v414, %v558
        %v695 = vmul.f32 %v414, %v565
        %v696 = vmul.f32 %v414, %v572
        %v697 = vmul.f32 %v414, %v579
        %v698 = vmul.f32 %v414, %v586
        %v699 = vmul.f32 %v414, %v593
        %v700 = vmul.f32 %v414, %v600
        %v701 = vmul.f32 %v414, %v607
        %v702 = vmul.f32 %v414, %v614
        %v703 = vmul.f32 %v414, %v621
        %v704 = vmul.f32 %v414, %v628
        %v705 = vmul.f32 %v414, %v635
        %v706 = vmul.f32 %v414, %v642
        %739 = vset.pattern.permute.xlu0 0
        %740 = vperm.xlu0 %739, %v675
        %v741 = vpop.permute.xlu0 %740
        %742 = vset.pattern.permute.xlu0 0
        %743 = vperm.xlu0 %742, %v676
        %v744 = vpop.permute.xlu0 %743
        %745 = vset.pattern.permute.xlu0 0
        %746 = vperm.xlu0 %745, %v677
        %v747 = vpop.permute.xlu0 %746
        %748 = vset.pattern.permute.xlu0 0
        %749 = vperm.xlu0 %748, %v678
        %v750 = vpop.permute.xlu0 %749
        %751 = vset.pattern.permute.xlu0 0
        %752 = vperm.xlu0 %751, %v679
        %v753 = vpop.permute.xlu0 %752
        %754 = vset.pattern.permute.xlu0 0
        %755 = vperm.xlu0 %754, %v680
        %v756 = vpop.permute.xlu0 %755
        %757 = vset.pattern.permute.xlu0 0
        %758 = vperm.xlu0 %757, %v681
        %v759 = vpop.permute.xlu0 %758
        %760 = vset.pattern.permute.xlu0 0
        %761 = vperm.xlu0 %760, %v682
        %v762 = vpop.permute.xlu0 %761
        %763 = vset.pattern.permute.xlu0 0
        %764 = vperm.xlu0 %763, %v683
        %v765 = vpop.permute.xlu0 %764
        %766 = vset.pattern.permute.xlu0 0
        %767 = vperm.xlu0 %766, %v684
        %v768 = vpop.permute.xlu0 %767
        %769 = vset.pattern.permute.xlu0 0
        %770 = vperm.xlu0 %769, %v685
        %v771 = vpop.permute.xlu0 %770
        %772 = vset.pattern.permute.xlu0 0
        %773 = vperm.xlu0 %772, %v686
        %v774 = vpop.permute.xlu0 %773
        %775 = vset.pattern.permute.xlu0 0
        %776 = vperm.xlu0 %775, %v687
        %v777 = vpop.permute.xlu0 %776
        %778 = vset.pattern.permute.xlu0 0
        %779 = vperm.xlu0 %778, %v688
        %v780 = vpop.permute.xlu0 %779
        %781 = vset.pattern.permute.xlu0 0
        %782 = vperm.xlu0 %781, %v689
        %v783 = vpop.permute.xlu0 %782
        %784 = vset.pattern.permute.xlu0 0
        %785 = vperm.xlu0 %784, %v690
        %v786 = vpop.permute.xlu0 %785
        %787 = vset.pattern.permute.xlu0 0
        %788 = vperm.xlu0 %787, %v691
        %v789 = vpop.permute.xlu0 %788
        %790 = vset.pattern.permute.xlu0 0
        %791 = vperm.xlu0 %790, %v692
        %v792 = vpop.permute.xlu0 %791
        %793 = vset.pattern.permute.xlu0 0
        %794 = vperm.xlu0 %793, %v693
        %v795 = vpop.permute.xlu0 %794
        %796 = vset.pattern.permute.xlu0 0
        %797 = vperm.xlu0 %796, %v694
        %v798 = vpop.permute.xlu0 %797
        %799 = vset.pattern.permute.xlu0 0
        %800 = vperm.xlu0 %799, %v695
        %v801 = vpop.permute.xlu0 %800
        %802 = vset.pattern.permute.xlu0 0
        %803 = vperm.xlu0 %802, %v696
        %v804 = vpop.permute.xlu0 %803
        %805 = vset.pattern.permute.xlu0 0
        %806 = vperm.xlu0 %805, %v697
        %v807 = vpop.permute.xlu0 %806
        %808 = vset.pattern.permute.xlu0 0
        %809 = vperm.xlu0 %808, %v698
        %v810 = vpop.permute.xlu0 %809
        %811 = vset.pattern.permute.xlu0 0
        %812 = vperm.xlu0 %811, %v699
        %v813 = vpop.permute.xlu0 %812
        %814 = vset.pattern.permute.xlu0 0
        %815 = vperm.xlu0 %814, %v700
        %v816 = vpop.permute.xlu0 %815
        %817 = vset.pattern.permute.xlu0 0
        %818 = vperm.xlu0 %817, %v701
        %v819 = vpop.permute.xlu0 %818
        %820 = vset.pattern.permute.xlu0 0
        %821 = vperm.xlu0 %820, %v702
        %v822 = vpop.permute.xlu0 %821
        %823 = vset.pattern.permute.xlu0 0
        %824 = vperm.xlu0 %823, %v703
        %v825 = vpop.permute.xlu0 %824
        %826 = vset.pattern.permute.xlu0 0
        %827 = vperm.xlu0 %826, %v704
        %v828 = vpop.permute.xlu0 %827
        %829 = vset.pattern.permute.xlu0 0
        %830 = vperm.xlu0 %829, %v705
        %v831 = vpop.permute.xlu0 %830
        %832 = vset.pattern.permute.xlu0 0
        %833 = vperm.xlu0 %832, %v706
        %v834 = vpop.permute.xlu0 %833
        %v835 = vperm.slane %v741, %v376
        %v836 = vperm.slane %v744, %v376
        %v837 = vperm.slane %v747, %v376
        %v838 = vperm.slane %v750, %v376
        %v839 = vperm.slane %v753, %v376
        %v840 = vperm.slane %v756, %v376
        %v841 = vperm.slane %v759, %v376
        %v842 = vperm.slane %v762, %v376
        %v843 = vperm.slane %v765, %v376
        %v844 = vperm.slane %v768, %v376
        %v845 = vperm.slane %v771, %v376
        %v846 = vperm.slane %v774, %v376
        %v847 = vperm.slane %v777, %v376
        %v848 = vperm.slane %v780, %v376
        %v849 = vperm.slane %v783, %v376
        %v850 = vperm.slane %v786, %v376
        %v851 = vperm.slane %v789, %v376
        %v852 = vperm.slane %v792, %v376
        %v853 = vperm.slane %v795, %v376
        %v854 = vperm.slane %v798, %v376
        %v855 = vperm.slane %v801, %v376
        %v856 = vperm.slane %v804, %v376
        %v857 = vperm.slane %v807, %v376
        %v858 = vperm.slane %v810, %v376
        %v859 = vperm.slane %v813, %v376
        %v860 = vperm.slane %v816, %v376
        %v861 = vperm.slane %v819, %v376
        %v862 = vperm.slane %v822, %v376
        %v863 = vperm.slane %v825, %v376
        %v864 = vperm.slane %v828, %v376
        %v865 = vperm.slane %v831, %v376
        %v866 = vperm.slane %v834, %v376
        %v867 = vsel %vm397, %v836, %v835
        %vm868 = vcmask 1042434
        %v869 = vsel %vm868, %v837, %v867
        %vm870 = vcmask 1043459
        %v871 = vsel %vm870, %v838, %v869
        %vm872 = vcmask 1044484
        %v873 = vsel %vm872, %v839, %v871
        %vm874 = vcmask 1045509
        %v875 = vsel %vm874, %v840, %v873
        %vm876 = vcmask 1046534
        %v877 = vsel %vm876, %v841, %v875
        %vm878 = vcmask 1047559
        %v879 = vsel %vm878, %v842, %v877
        %v880 = vsel %vm397, %v844, %v843
        %v881 = vsel %vm868, %v845, %v880
        %v882 = vsel %vm870, %v846, %v881
        %v883 = vsel %vm872, %v847, %v882
        %v884 = vsel %vm874, %v848, %v883
        %v885 = vsel %vm876, %v849, %v884
        %v886 = vsel %vm878, %v850, %v885
        %v887 = vsel %vm397, %v852, %v851
        %v888 = vsel %vm868, %v853, %v887
        %v889 = vsel %vm870, %v854, %v888
        %v890 = vsel %vm872, %v855, %v889
        %v891 = vsel %vm874, %v856, %v890
        %v892 = vsel %vm876, %v857, %v891
        %v893 = vsel %vm878, %v858, %v892
        %v894 = vsel %vm397, %v860, %v859
        %v895 = vsel %vm868, %v861, %v894
        %v896 = vsel %vm870, %v862, %v895
        %v897 = vsel %vm872, %v863, %v896
        %v898 = vsel %vm874, %v864, %v897
        %v899 = vsel %vm876, %v865, %v898
        %v900 = vsel %vm878, %v866, %v899
        %vm905 = vcmask 15360
        %v906 = vsel %vm905, %v879, 0.0
        %907 = vadd.xlane.f32.xlu0 %v906
        %v908 = vpop.xlane.xlu0 %907
        %v909 = vsel %vm905, %v886, 0.0
        %910 = vadd.xlane.f32.xlu0 %v909
        %v911 = vpop.xlane.xlu0 %910
        %v912 = vsel %vm905, %v893, 0.0
        %913 = vadd.xlane.f32.xlu0 %v912
        %v914 = vpop.xlane.xlu0 %913
        %v915 = vsel %vm905, %v900, 0.0
        %916 = vadd.xlane.f32.xlu0 %v915
        %v917 = vpop.xlane.xlu0 %916
        %v919 = vperm.slane %v275, 0
        %v920 = vlaneseq
        %v921 = vshrl.u32 %v920, 7
        %923 = vset.pattern.permute.xlu0 %v921
        %924 = vperm.xlu0 %923, %v919
        %v925 = vpop.permute.xlu0 %924
        %v926 = vlaneseq
        %v927 = vshrl.u32 %v926, 7
        %v928 = vadd.s32 %v927, 8
        %929 = vset.pattern.permute.xlu0 %v928
        %930 = vperm.xlu0 %929, %v919
        %v931 = vpop.permute.xlu0 %930
        %v932 = vlaneseq
        %v933 = vshrl.u32 %v932, 7
        %v934 = vadd.s32 %v933, 16
        %935 = vset.pattern.permute.xlu0 %v934
        %936 = vperm.xlu0 %935, %v919
        %v937 = vpop.permute.xlu0 %936
        %v938 = vlaneseq
        %v939 = vshrl.u32 %v938, 7
        %v940 = vadd.s32 %v939, 24
        %941 = vset.pattern.permute.xlu0 %v940
        %942 = vperm.xlu0 %941, %v919
        %v943 = vpop.permute.xlu0 %942
        %v948 = vadd.f32 %v908, %v925
        %v949 = vadd.f32 %v911, %v931
        %v950 = vadd.f32 %v914, %v937
        %v951 = vadd.f32 %v917, %v943
        %v952 = vxor.u32 %v948, 2147483648
        %v953 = vxor.u32 %v949, 2147483648
        %v954 = vxor.u32 %v950, 2147483648
        %v955 = vxor.u32 %v951, 2147483648
        %v956 = vmul.f32 %v952, 1.442695
        %v957 = vpow.pop %v956
        %v958 = vmul.f32 %v953, 1.442695
        %v959 = vpow.pop %v958
        %v960 = vmul.f32 %v954, 1.442695
        %v961 = vpow.pop %v960
        %v962 = vmul.f32 %v955, 1.442695
        %v963 = vpow.pop %v962
        %v964 = vadd.f32 %v957, 1.0
        %v965 = vadd.f32 %v959, 1.0
        %v966 = vadd.f32 %v961, 1.0
        %v967 = vadd.f32 %v963, 1.0
        %v968 = vrcp.pop %v964
        %v969 = vmul.f32 %v964, %v968
        %v970 = vsub.f32 1.0, %v969
        %v971 = vmul.f32 %v968, %v970
        %v972 = vadd.f32 %v968, %v971
        %vm973 = vweird.f32 %v964
        %vm974 = vweird.f32 %v968
        %vm975 = vmor %vm973, %vm974
        %v976 = vsel %vm975, %v968, %v972
        %v977 = vand.u32 2147483647, %v964
        %vm978 = vcmp.eq.f32.partialorder %v977, 8.507059e+37
        %v979 = vand.u32 %v964, 2147483648
        %v980 = vor.u32 1.1754944e-38, %v979
        %v981 = vsel %vm978, %v980, %v976
        %v982 = vmul.f32 1.0, %v981
        %v983 = vrcp.pop %v965
        %v984 = vmul.f32 %v965, %v983
        %v985 = vsub.f32 1.0, %v984
        %v986 = vmul.f32 %v983, %v985
        %v987 = vadd.f32 %v983, %v986
        %vm988 = vweird.f32 %v965
        %vm989 = vweird.f32 %v983
        %vm990 = vmor %vm988, %vm989
        %v991 = vsel %vm990, %v983, %v987
        %v992 = vand.u32 2147483647, %v965
        %vm993 = vcmp.eq.f32.partialorder %v992, 8.507059e+37
        %v994 = vand.u32 %v965, 2147483648
        %v995 = vor.u32 1.1754944e-38, %v994
        %v996 = vsel %vm993, %v995, %v991
        %v997 = vmul.f32 1.0, %v996
        %v998 = vrcp.pop %v966
        %v999 = vmul.f32 %v966, %v998
        %v1000 = vsub.f32 1.0, %v999
        %v1001 = vmul.f32 %v998, %v1000
        %v1002 = vadd.f32 %v998, %v1001
        %vm1003 = vweird.f32 %v966
        %vm1004 = vweird.f32 %v998
        %vm1005 = vmor %vm1003, %vm1004
        %v1006 = vsel %vm1005, %v998, %v1002
        %v1007 = vand.u32 2147483647, %v966
        %vm1008 = vcmp.eq.f32.partialorder %v1007, 8.507059e+37
        %v1009 = vand.u32 %v966, 2147483648
        %v1010 = vor.u32 1.1754944e-38, %v1009
        %v1011 = vsel %vm1008, %v1010, %v1006
        %v1012 = vmul.f32 1.0, %v1011
        %v1013 = vrcp.pop %v967
        %v1014 = vmul.f32 %v967, %v1013
        %v1015 = vsub.f32 1.0, %v1014
        %v1016 = vmul.f32 %v1013, %v1015
        %v1017 = vadd.f32 %v1013, %v1016
        %vm1018 = vweird.f32 %v967
        %vm1019 = vweird.f32 %v1013
        %vm1020 = vmor %vm1018, %vm1019
        %v1021 = vsel %vm1020, %v1013, %v1017
        %v1022 = vand.u32 2147483647, %v967
        %vm1023 = vcmp.eq.f32.partialorder %v1022, 8.507059e+37
        %v1024 = vand.u32 %v967, 2147483648
        %v1025 = vor.u32 1.1754944e-38, %v1024
        %v1026 = vsel %vm1023, %v1025, %v1021
        %v1027 = vmul.f32 1.0, %v1026
        %1029 = vset.pattern.permute.xlu0 0
        %1030 = vperm.xlu0 %1029, %v982
        %v1031 = vpop.permute.xlu0 %1030
        %1034 = vset.pattern.permute.xlu0 0
        %1035 = vperm.xlu0 %1034, %v997
        %v1036 = vpop.permute.xlu0 %1035
        %1039 = vset.pattern.permute.xlu0 0
        %1040 = vperm.xlu0 %1039, %v1012
        %v1041 = vpop.permute.xlu0 %1040
        %1044 = vset.pattern.permute.xlu0 0
        %1045 = vperm.xlu0 %1044, %v1027
        %v1046 = vpop.permute.xlu0 %1045
        %v1048 = vmul.f32 %v245, %v1031
        %v1049 = vmul.f32 %v246, %v1031
        %v1050 = vmul.f32 %v247, %v1036
        %v1051 = vmul.f32 %v248, %v1036
        %v1052 = vmul.f32 %v249, %v1041
        %v1053 = vmul.f32 %v250, %v1041
        %v1054 = vmul.f32 %v251, %v1046
        %v1055 = vmul.f32 %v252, %v1046
        %1056 = vst [vmem:[%s244] sm:$0xff] %v1048
        %1057 = vst [vmem:[%s244 + $0x8] sm:$0xff] %v1049
        %1058 = vst [vmem:[%s244 + $0x10] sm:$0xff] %v1050
        %1059 = vst [vmem:[%s244 + $0x18] sm:$0xff] %v1051
        %1060 = vst [vmem:[%s244 + $0x20] sm:$0xff] %v1052
        %1061 = vst [vmem:[%s244 + $0x28] sm:$0xff] %v1053
        %1062 = vst [vmem:[%s244 + $0x30] sm:$0xff] %v1054
        %1063 = vst [vmem:[%s244 + $0x38] sm:$0xff] %v1055
        %s1064 = sand.u32 %s140, 1
        %s1065 = scalar_lea.sflag [#allocation4], %s1064
        %s1066 = sand.u32 %s140, 1
        %s1067 = smul.addr %s1066, 64
        %s1068 = scalar_lea.vmem [#allocation5], %s1067
        // Predicated region
        $region45: #{tpu_custom_call.1} parent=39 // pred_check
          %p1069 = pneg %p150
        $region46: #{tpu_custom_call.1} parent=39 // pred_check_branch
          %1071 = sbr.rel (%p1069) target = $region48
        $region47: #{tpu_custom_call.1} parent=39 // pred_region
          %1073 = vsyncadd %s1065, 0
          %s1074 = smul.addr %s22, 8
          %s1075 = smul.addr %s1074, 8
          %s1076 = scalar_lea.hbm %s5, %s1075
          %s1077 = sshll.u32 %s1068, 4
          %s1078 = int_to_ptr.vmem [resolvable:$true] %s1077
          %s1079 = sshll.u32 %s1076, 4
          %s1080 = int_to_ptr.hbm [resolvable:$true] %s1079
          %1085 = dma.vmem_to_hbm [thread:$0]  %s1078, 1024, %s1080, %s1065, 256, 256, 16
        $region48: #{tpu_custom_call.1} parent=39 // pred_fallthru
          _
      $region40: #{tpu_custom_call.1} parent=5 // pred_fallthru
        _
      %p1086 = scmp.le.s32.totalorder 2, %s17
      // Predicated region
      $region49: #{tpu_custom_call.1} parent=5 // pred_check
        %p1087 = pneg %p1086
      $region50: #{tpu_custom_call.1} parent=5 // pred_check_branch
        %1089 = sbr.rel (%p1087) target = $region52
      $region51: #{tpu_custom_call.1} parent=5 // pred_region
        %s1090 = ssub.s32 %s17, 2
        // Predicated region
        $region53: #{tpu_custom_call.1} parent=51 // pred_check
          %p1091 = pneg %p156
        $region54: #{tpu_custom_call.1} parent=51 // pred_check_branch
          %1093 = sbr.rel (%p1091) target = $region56
        $region55: #{tpu_custom_call.1} parent=51 // pred_region
          %s1094 = sand.u32 %s141, 1
          %s1095 = scalar_lea.sflag [#allocation4], %s1094
          %s1096 = sand.u32 %s141, 1
          %s1097 = smul.addr %s1096, 64
          %s1098 = scalar_lea.vmem [#allocation5], %s1097
          %1100 = dma.done %s1095, 1024
        $region56: #{tpu_custom_call.1} parent=51 // pred_fallthru
          _
      $region52: #{tpu_custom_call.1} parent=5 // pred_fallthru
        _
    $region6: #{tpu_custom_call.1} parent=1 // loop_footer
      %s21 = sadd.s32 1, %s17
    $region7: #{tpu_custom_call.1} parent=1 // loop_footer_branch
      %16 = sbr.rel target = $region3
    $region8: #{tpu_custom_call.1} parent=1 // loop_exit
      _
    %1101 = vsyncpa [#allocation3], 1
    %s1102 = scalar_lea.sflag [#allocation3], 1
    %1103 = vsyncpa %s1102, 1
    %1104 = vsyncpa [#allocation4], 1
    %s1105 = scalar_lea.sflag [#allocation4], 1
    %1106 = vsyncpa %s1105, 1

</llo_original>
